<compile_context>
chip_gen: v5e
topology: v5e:2x2
jax: 0.10.0
libtpu: 0.0.40
codegen_flags: <defaults>
</compile_context>

<pallas_src>
import jax
import jax.numpy as jnp
from jax import lax
from jax.experimental import pallas as pl
from jax.experimental.pallas import tpu as pltpu


def _round_up(n, m):
    return ((n + m - 1) // m) * m


def _pick_tile(dim, target, align):
    """Largest multiple of `align` that divides `dim`, no bigger than max(target, align)."""
    best = None
    limit = min(dim, max(target, align))
    t = align
    while t <= limit:
        if dim % t == 0:
            best = t
        t += align
    return best if best is not None else dim


def prepare_qweight(qweight):
    """One-time (offline / load-time) repack of the module's int4 buffer.

    Module packing:  byte j -> low nibble = column 2j,  high nibble = column 2j+1.
    Kernel packing:  byte j -> low nibble = column j,   high nibble = column j + K//2.

    Lets the kernel read the activations through two contiguous halves. Hoisted out
    of the forward path so weight-bound decode steps don't pay it every call.
    """
    q = qweight.astype(jnp.uint8)
    out_f, kh = q.shape
    low = q & jnp.uint8(0xF)                                   # original even columns
    high = q >> jnp.uint8(4)                                   # original odd columns
    cols = jnp.stack([low, high], axis=-1).reshape(out_f, 2 * kh)
    first, second = cols[:, :kh], cols[:, kh:]
    return (first | (second << jnp.uint8(4))).astype(jnp.uint8)


def _make_kernel(has_outlier, has_bias):
    def kernel(*refs):
        it = iter(refs)
        x_lo_ref = next(it)
        x_hi_ref = next(it)
        qw_ref = next(it)
        scales_ref = next(it)
        ox_ref = next(it) if has_outlier else None
        wo_ref = next(it) if has_outlier else None
        bias_ref = next(it) if has_bias else None
        o_ref = next(it)
        acc_ref = next(it)

        k = pl.program_id(2)

        @pl.when(k == 0)
        def _init():
            acc_ref[...] = jnp.zeros_like(acc_ref)

        # Sign-extend int4 nibbles with arithmetic shifts, single cast to bf16
        # (no f32 intermediate).  Row scale is applied to the output tile, not here.
        qw = qw_ref[...].astype(jnp.int32)                     # (tn, tkh) packed bytes
        w_lo = ((qw << 28) >> 28).astype(jnp.bfloat16)         # cols [k*tkh, ...)
        w_hi = ((qw << 24) >> 28).astype(jnp.bfloat16)         # cols K/2 + [k*tkh, ...)

        dn = (((1,), (1,)), ((), ()))                          # contract last dims, no transpose
        acc_ref[...] += (
            lax.dot_general(x_lo_ref[...], w_lo, dn, preferred_element_type=jnp.float32)
            + lax.dot_general(x_hi_ref[...], w_hi, dn, preferred_element_type=jnp.float32))

        @pl.when(k == pl.num_programs(2) - 1)
        def _finalize():
            y = acc_ref[...] * scales_ref[...]                 # (tm, tn) * (1, tn)
            if has_outlier:
                ox = ox_ref[...]                               # (tm, R) f32
                wo = wo_ref[...]                               # (R, tn) f32
                for r in range(wo.shape[0]):                   # R ~ 4, static
                    y = y + ox[:, r:r + 1] * wo[r:r + 1, :]
            if has_bias:
                y = y + bias_ref[...]                          # (1, tn)
            o_ref[...] = y.astype(o_ref.dtype)

    return kernel


def tunable_quant_linear(x, outlier_x, qweight, weight_scales, w_outlier, bias,
                         *, tm=512, tn=512, tk=1024, out_dtype=None, prepacked=False):
    """Forward of TunableQuantLinear.

    x:             (..., K) float
    outlier_x:     (..., R) float (ignored when w_outlier is None)
    qweight:       (O, K//2) uint8; module packing unless prepacked=True (then the
                   buffer returned by prepare_qweight)
    weight_scales: (O, 1) float
    w_outlier:     (O, R) float or None
    bias:          (O,) float or None
    out_dtype:     output dtype (default: x.dtype)
    """
    out_f, kh = qweight.shape
    k_feat = 2 * kh
    lead = x.shape[:-1]
    assert x.shape[-1] == k_feat

    if out_dtype is None:
        out_dtype = x.dtype

    qw = qweight if prepacked else prepare_qweight(qweight)
    qw = qw.astype(jnp.uint8)

    has_outlier = w_outlier is not None
    has_bias = bias is not None

    # bf16 activations: native MXU input dtype; accumulation stays f32 in the kernel.
    x2 = x.reshape(-1, k_feat).astype(jnp.bfloat16)
    n = x2.shape[0]

    # ---- K padding (only for non-128-aligned K//2); keeps the two contiguous halves. ----
    kh_pad = _round_up(kh, 128)
    if kh_pad != kh:
        lo, hi = x2[:, :kh], x2[:, kh:]
        zc = jnp.zeros((n, kh_pad - kh), x2.dtype)
        x2 = jnp.concatenate([lo, zc, hi, zc], axis=1)
        qw = jnp.pad(qw, ((0, 0), (0, kh_pad - kh)))           # zero nibbles dequant to 0
        kh = kh_pad

    # ---- O padding for non-128-aligned out_features. ----
    out_f_pad = _round_up(out_f, 128)
    scales = weight_scales.astype(jnp.float32).reshape(1, out_f)
    wo_t = w_outlier.astype(jnp.float32).T if has_outlier else None      # (R, O)
    bias_row = bias.astype(jnp.float32).reshape(1, out_f) if has_bias else None
    if out_f_pad != out_f:
        pad_o = out_f_pad - out_f
        qw = jnp.pad(qw, ((0, pad_o), (0, 0)))
        scales = jnp.pad(scales, ((0, 0), (0, pad_o)))
        if has_outlier:
            wo_t = jnp.pad(wo_t, ((0, 0), (0, pad_o)))
        if has_bias:
            bias_row = jnp.pad(bias_row, ((0, 0), (0, pad_o)))

    # ---- tile selection ----
    tm_eff = min(tm, _round_up(n, 16))
    tm_eff = max(16, (tm_eff // 16) * 16)
    tkh_eff = _pick_tile(kh, max(tk // 2, 128), 128)
    tn_eff = _pick_tile(out_f_pad, tn, 128)

    n_pad = _round_up(n, tm_eff)
    n_row_tiles = n_pad // tm_eff

    # Keep >= 2 parallel (i, j) tiles so both v7x TensorCores get work in decode.
    if n_row_tiles == 1:
        while out_f_pad // tn_eff < 2 and tn_eff > 128:
            smaller = _pick_tile(out_f_pad, tn_eff // 2, 128)
            if smaller >= tn_eff:
                break
            tn_eff = smaller

    if n_pad != n:
        x2 = jnp.pad(x2, ((0, n_pad - n), (0, 0)))

    ox2 = None
    r_dim = 0
    if has_outlier:
        r_dim = w_outlier.shape[1]
        ox2 = outlier_x.reshape(-1, r_dim).astype(jnp.float32)
        if n_pad != n:
            ox2 = jnp.pad(ox2, ((0, n_pad - n), (0, 0)))

    n_k = kh // tkh_eff
    grid = (n_pad // tm_eff, out_f_pad // tn_eff, n_k)

    # x is passed twice; each BlockSpec reads one contiguous half, so the total
    # activation HBM traffic per O-tile is exactly one pass over x.
    in_specs = [
        pl.BlockSpec((tm_eff, tkh_eff), lambda i, j, k: (i, k)),           # x[:, :K/2]
        pl.BlockSpec((tm_eff, tkh_eff), lambda i, j, k: (i, k + n_k)),     # x[:, K/2:]
        pl.BlockSpec((tn_eff, tkh_eff), lambda i, j, k: (j, k)),           # packed int4
        pl.BlockSpec((1, tn_eff), lambda i, j, k: (0, j)),                 # row scales
    ]
    operands = [x2, x2, qw, scales]
    if has_outlier:
        in_specs.append(pl.BlockSpec((tm_eff, r_dim), lambda i, j, k: (i, 0)))   # outlier acts
        in_specs.append(pl.BlockSpec((r_dim, tn_eff), lambda i, j, k: (0, j)))   # outlier weights
        operands += [ox2, wo_t]
    if has_bias:
        in_specs.append(pl.BlockSpec((1, tn_eff), lambda i, j, k: (0, j)))       # bias row
        operands.append(bias_row)

    # ---- VMEM budget: double-buffered streams + acc + unpack temporaries; set an
    # explicit scoped limit so big tiles work on v5e (16 MiB default) without
    # exceeding v7x's 64 MiB/TC physical VMEM. ----
    out_itemsize = jnp.dtype(out_dtype).itemsize
    step_in = 2 * tm_eff * tkh_eff * 2 + tn_eff * tkh_eff       # bf16 x halves + u8 weights
    out_tile = tm_eff * tn_eff * out_itemsize
    acc_tile = tm_eff * tn_eff * 4
    unpack_tmp = tn_eff * tkh_eff * (4 + 2 + 2)                 # i32 widen + two bf16 tiles
    small = 16 * tn_eff * 4 + 16 * tm_eff * 4
    vmem_est = 2 * step_in + 2 * out_tile + acc_tile + unpack_tmp + small
    vmem_limit = int(min(max(1.5 * vmem_est + (4 << 20), 32 << 20), 48 << 20))

    kernel = _make_kernel(has_outlier, has_bias)
    out = pl.pallas_call(
        kernel,
        out_shape=jax.ShapeDtypeStruct((n_pad, out_f_pad), out_dtype),
        grid_spec=pltpu.PrefetchScalarGridSpec(
            num_scalar_prefetch=0,
            grid=grid,
            in_specs=in_specs,
            out_specs=pl.BlockSpec((tm_eff, tn_eff), lambda i, j, k: (i, j)),
            scratch_shapes=[pltpu.VMEM((tm_eff, tn_eff), jnp.float32)],
        ),
        compiler_params=pltpu.CompilerParams(
            dimension_semantics=("parallel", "parallel", "arbitrary"),
            vmem_limit_bytes=vmem_limit),
    )(*operands)

    return out[:n, :out_f].reshape(*lead, out_f)


def _reference(x, outlier_x, qweight, weight_scales, w_outlier, bias):
    # Pure-JAX reference of the module forward.  The quantized matmul is evaluated
    # with activations rounded to bf16 — the MXU input precision the kernel uses
    # (accumulation in f32) — so it matches the kernel to f32 round-off.
    q = qweight.astype(jnp.int32)
    low = q & 0xF
    high = (q >> 4) & 0xF
    low = jnp.where(low >= 8, low - 16, low)
    high = jnp.where(high >= 8, high - 16, high)
    w_int = jnp.stack([low, high], axis=-1).reshape(qweight.shape[0], -1)
    w = w_int.astype(jnp.float32) * weight_scales
    xb = x.astype(jnp.bfloat16).astype(jnp.float32)
    y = jnp.einsum("...k,ok->...o", xb, w, precision=lax.Precision.HIGHEST)
    if w_outlier is not None:
        y = y + jnp.einsum("...r,or->...o", outlier_x.astype(jnp.float32),
                           w_outlier.astype(jnp.float32),
                           precision=lax.Precision.HIGHEST)
    if bias is not None:
        y = y + bias
    return y


if __name__ == "__main__":
    # Small, lane-aligned shapes consistent with the module:
    # (batch, seq, in_features) activations, pod_rank outlier features.
    batch, seq = 2, 8
    in_features, out_features, pod_rank = 256, 256, 4

    key = jax.random.PRNGKey(0)
    k1, k2, k3, k4, k5, k6 = jax.random.split(key, 6)

    x = jax.random.normal(k1, (batch, seq, in_features), dtype=jnp.float32)
    outlier_x = jax.random.normal(k2, (batch, seq, pod_rank), dtype=jnp.float32)
    qweight = jax.random.randint(
        k3, (out_features, in_features // 2), 0, 256, dtype=jnp.int32).astype(jnp.uint8)
    weight_scales = jax.random.uniform(
        k4, (out_features, 1), minval=0.01, maxval=0.1, dtype=jnp.float32)
    w_outlier = jax.random.normal(k5, (out_features, pod_rank), dtype=jnp.float32)
    bias = jax.random.normal(k6, (out_features,), dtype=jnp.float32)

    # One-time offline repack (hoisted out of the forward path).
    qweight_packed = jax.block_until_ready(prepare_qweight(qweight))

    y = tunable_quant_linear(x, outlier_x, qweight_packed, weight_scales,
                             w_outlier, bias, prepacked=True)
    y = jax.block_until_ready(y)

    y_ref = _reference(x, outlier_x, qweight, weight_scales, w_outlier, bias)

    assert y.shape == (batch, seq, out_features)
    max_err = float(jnp.max(jnp.abs(y - y_ref)))
    assert jnp.allclose(y, y_ref, rtol=1e-2, atol=1e-2), (
        "mismatch vs reference: max abs err %e" % max_err)
    print("KERNEL_OK")
</pallas_src>

<mosaic_0001>
module attributes {stable_mosaic.version = 11 : i64} {
  func.func @kernel(%arg0: i32, %arg1: i32, %arg2: i32, %arg3: memref<16x128xbf16, #tpu.memory_space<vmem>>, %arg4: memref<16x128xbf16, #tpu.memory_space<vmem>>, %arg5: memref<128x128xi8, #tpu.memory_space<vmem>>, %arg6: memref<1x128xf32, #tpu.memory_space<vmem>>, %arg7: memref<16x4xf32, #tpu.memory_space<vmem>>, %arg8: memref<4x128xf32, #tpu.memory_space<vmem>>, %arg9: memref<1x128xf32, #tpu.memory_space<vmem>>, %arg10: memref<16x128xf32, #tpu.memory_space<vmem>>, %arg11: memref<16x128xf32, #tpu.memory_space<vmem>>) attributes {dimension_semantics = [#tpu.dimension_semantics<parallel>, #tpu.dimension_semantics<parallel>, #tpu.dimension_semantics<arbitrary>], iteration_bounds = array<i64: 1, 2, 1>, scalar_prefetch = 0 : i64, scratch_operands = 1 : i64, tpu.core_type = #tpu.core_type<tc>, window_params = [{transform_indices = @transform_0, window_bounds = array<i64: 16, 128>}, {transform_indices = @transform_1, window_bounds = array<i64: 16, 128>}, {transform_indices = @transform_2, window_bounds = array<i64: 128, 128>}, {transform_indices = @transform_3, window_bounds = array<i64: 1, 128>}, {transform_indices = @transform_4, window_bounds = array<i64: 16, 4>}, {transform_indices = @transform_5, window_bounds = array<i64: 4, 128>}, {transform_indices = @transform_6, window_bounds = array<i64: 1, 128>}, {transform_indices = @transform_7, window_bounds = array<i64: 16, 128>}]} {
    %c0_i32 = arith.constant 0 : i32
    %0 = arith.cmpi eq, %arg2, %c0_i32 : i32
    %1 = arith.extui %0 : i1 to i32
    %c0_i32_0 = arith.constant 0 : i32
    %2 = arith.cmpi ne, %1, %c0_i32_0 : i32
    scf.if %2 {
      %cst_15 = arith.constant 0.000000e+00 : f32
      %26 = vector.broadcast %cst_15 : f32 to vector<16x128xf32>
      %c0_16 = arith.constant 0 : index
      %c0_17 = arith.constant 0 : index
      %27 = vector.load %arg11[%c0_16, %c0_17] : memref<16x128xf32, #tpu.memory_space<vmem>>, vector<16x128xf32>
      tpu.vector_store %arg11[%c0_16, %c0_17], %26 {strides = array<i32>} : memref<16x128xf32, #tpu.memory_space<vmem>>, vector<16x128xf32>,
    } else {
    }
    %c0 = arith.constant 0 : index
    %c0_1 = arith.constant 0 : index
    %3 = vector.load %arg5[%c0, %c0_1] : memref<128x128xi8, #tpu.memory_space<vmem>>, vector<128x128xi8>
    %4 = arith.extui %3 : vector<128x128xi8> to vector<128x128xi32>
    %c28_i32 = arith.constant 28 : i32
    %5 = vector.broadcast %c28_i32 : i32 to vector<128x128xi32>
    %6 = arith.shli %4, %5 : vector<128x128xi32>
    %c28_i32_2 = arith.constant 28 : i32
    %7 = vector.broadcast %c28_i32_2 : i32 to vector<128x128xi32>
    %8 = arith.shrsi %6, %7 : vector<128x128xi32>
    %9 = arith.sitofp %8 : vector<128x128xi32> to vector<128x128xbf16>
    %c24_i32 = arith.constant 24 : i32
    %10 = vector.broadcast %c24_i32 : i32 to vector<128x128xi32>
    %11 = arith.shli %4, %10 : vector<128x128xi32>
    %c28_i32_3 = arith.constant 28 : i32
    %12 = vector.broadcast %c28_i32_3 : i32 to vector<128x128xi32>
    %13 = arith.shrsi %11, %12 : vector<128x128xi32>
    %14 = arith.sitofp %13 : vector<128x128xi32> to vector<128x128xbf16>
    %c0_4 = arith.constant 0 : index
    %c0_5 = arith.constant 0 : index
    %15 = vector.load %arg11[%c0_4, %c0_5] : memref<16x128xf32, #tpu.memory_space<vmem>>, vector<16x128xf32>
    %c0_6 = arith.constant 0 : index
    %c0_7 = arith.constant 0 : index
    %16 = vector.load %arg3[%c0_6, %c0_7] : memref<16x128xbf16, #tpu.memory_space<vmem>>, vector<16x128xbf16>
    %cst = arith.constant dense<0.000000e+00> : vector<16x128xf32>
    %17 = tpu.matmul %16, %9, %cst {dimension_numbers = #tpu.dot_dimension_numbers<[1], [1], [0], [0], [0, 0, 1, 0], [], []>} : vector<16x128xbf16>, vector<128x128xbf16>, vector<16x128xf32> -> vector<16x128xf32>
    %c0_8 = arith.constant 0 : index
    %c0_9 = arith.constant 0 : index
    %18 = vector.load %arg4[%c0_8, %c0_9] : memref<16x128xbf16, #tpu.memory_space<vmem>>, vector<16x128xbf16>
    %cst_10 = arith.constant dense<0.000000e+00> : vector<16x128xf32>
    %19 = tpu.matmul %18, %14, %cst_10 {dimension_numbers = #tpu.dot_dimension_numbers<[1], [1], [0], [0], [0, 0, 1, 0], [], []>} : vector<16x128xbf16>, vector<128x128xbf16>, vector<16x128xf32> -> vector<16x128xf32>
    %20 = arith.addf %17, %19 : vector<16x128xf32>
    %21 = arith.addf %15, %20 : vector<16x128xf32>
    %c0_11 = arith.constant 0 : index
    %c0_12 = arith.constant 0 : index
    %22 = vector.load %arg11[%c0_11, %c0_12] : memref<16x128xf32, #tpu.memory_space<vmem>>, vector<16x128xf32>
    tpu.vector_store %arg11[%c0_11, %c0_12], %21 {strides = array<i32>} : memref<16x128xf32, #tpu.memory_space<vmem>>, vector<16x128xf32>,
    %c0_i32_13 = arith.constant 0 : i32
    %23 = arith.cmpi eq, %arg2, %c0_i32_13 : i32
    %24 = arith.extui %23 : i1 to i32
    %c0_i32_14 = arith.constant 0 : i32
    %25 = arith.cmpi ne, %24, %c0_i32_14 : i32
    scf.if %25 {
      %c0_15 = arith.constant 0 : index
      %c0_16 = arith.constant 0 : index
      %26 = vector.load %arg11[%c0_15, %c0_16] : memref<16x128xf32, #tpu.memory_space<vmem>>, vector<16x128xf32>
      %c0_17 = arith.constant 0 : index
      %c0_18 = arith.constant 0 : index
      %27 = vector.load %arg6[%c0_17, %c0_18] : memref<1x128xf32, #tpu.memory_space<vmem>>, vector<1x128xf32>
      %28 = vector.broadcast %27 : vector<1x128xf32> to vector<16x128xf32>
      %29 = arith.mulf %26, %28 : vector<16x128xf32>
      %c0_19 = arith.constant 0 : index
      %c0_20 = arith.constant 0 : index
      %30 = vector.load %arg7[%c0_19, %c0_20] : memref<16x4xf32, #tpu.memory_space<vmem>>, vector<16x4xf32>
      %c0_21 = arith.constant 0 : index
      %c0_22 = arith.constant 0 : index
      %31 = vector.load %arg8[%c0_21, %c0_22] : memref<4x128xf32, #tpu.memory_space<vmem>>, vector<4x128xf32>
      %32 = vector.extract_strided_slice %30 {offsets = [0, 0], sizes = [16, 1], strides = [1, 1]} : vector<16x4xf32> to vector<16x1xf32>
      %33 = vector.extract_strided_slice %31 {offsets = [0, 0], sizes = [1, 128], strides = [1, 1]} : vector<4x128xf32> to vector<1x128xf32>
      %34 = vector.broadcast %32 : vector<16x1xf32> to vector<16x128xf32>
      %35 = vector.broadcast %33 : vector<1x128xf32> to vector<16x128xf32>
      %36 = arith.mulf %34, %35 : vector<16x128xf32>
      %37 = arith.addf %29, %36 : vector<16x128xf32>
      %38 = vector.extract_strided_slice %30 {offsets = [0, 1], sizes = [16, 1], strides = [1, 1]} : vector<16x4xf32> to vector<16x1xf32>
      %39 = vector.extract_strided_slice %31 {offsets = [1, 0], sizes = [1, 128], strides = [1, 1]} : vector<4x128xf32> to vector<1x128xf32>
      %40 = vector.broadcast %38 : vector<16x1xf32> to vector<16x128xf32>
      %41 = vector.broadcast %39 : vector<1x128xf32> to vector<16x128xf32>
      %42 = arith.mulf %40, %41 : vector<16x128xf32>
      %43 = arith.addf %37, %42 : vector<16x128xf32>
      %44 = vector.extract_strided_slice %30 {offsets = [0, 2], sizes = [16, 1], strides = [1, 1]} : vector<16x4xf32> to vector<16x1xf32>
      %45 = vector.extract_strided_slice %31 {offsets = [2, 0], sizes = [1, 128], strides = [1, 1]} : vector<4x128xf32> to vector<1x128xf32>
      %46 = vector.broadcast %44 : vector<16x1xf32> to vector<16x128xf32>
      %47 = vector.broadcast %45 : vector<1x128xf32> to vector<16x128xf32>
      %48 = arith.mulf %46, %47 : vector<16x128xf32>
      %49 = arith.addf %43, %48 : vector<16x128xf32>
      %50 = vector.extract_strided_slice %30 {offsets = [0, 3], sizes = [16, 1], strides = [1, 1]} : vector<16x4xf32> to vector<16x1xf32>
      %51 = vector.extract_strided_slice %31 {offsets = [3, 0], sizes = [1, 128], strides = [1, 1]} : vector<4x128xf32> to vector<1x128xf32>
      %52 = vector.broadcast %50 : vector<16x1xf32> to vector<16x128xf32>
      %53 = vector.broadcast %51 : vector<1x128xf32> to vector<16x128xf32>
      %54 = arith.mulf %52, %53 : vector<16x128xf32>
      %55 = arith.addf %49, %54 : vector<16x128xf32>
      %c0_23 = arith.constant 0 : index
      %c0_24 = arith.constant 0 : index
      %56 = vector.load %arg9[%c0_23, %c0_24] : memref<1x128xf32, #tpu.memory_space<vmem>>, vector<1x128xf32>
      %57 = vector.broadcast %56 : vector<1x128xf32> to vector<16x128xf32>
      %58 = arith.addf %55, %57 : vector<16x128xf32>
      %c0_25 = arith.constant 0 : index
      %c0_26 = arith.constant 0 : index
      %59 = vector.load %arg10[%c0_25, %c0_26] : memref<16x128xf32, #tpu.memory_space<vmem>>, vector<16x128xf32>
      tpu.vector_store %arg10[%c0_25, %c0_26], %58 {strides = array<i32>} : memref<16x128xf32, #tpu.memory_space<vmem>>, vector<16x128xf32>,
    } else {
    }
    return
  }
  func.func @transform_0(%arg0: i32, %arg1: i32, %arg2: i32) -> (i32, i32) {
    %c0_i32 = arith.constant 0 : i32
    return %arg0, %arg2 : i32, i32
  }
  func.func @transform_1(%arg0: i32, %arg1: i32, %arg2: i32) -> (i32, i32) {
    %c1_i32 = arith.constant 1 : i32
    %0 = arith.addi %arg2, %c1_i32 : i32
    %c0_i32 = arith.constant 0 : i32
    return %arg0, %0 : i32, i32
  }
  func.func @transform_2(%arg0: i32, %arg1: i32, %arg2: i32) -> (i32, i32) {
    %c0_i32 = arith.constant 0 : i32
    return %arg1, %arg2 : i32, i32
  }
  func.func @transform_3(%arg0: i32, %arg1: i32, %arg2: i32) -> (i32, i32) {
    %c0_i32 = arith.constant 0 : i32
    %c0_i32_0 = arith.constant 0 : i32
    return %c0_i32, %arg1 : i32, i32
  }
  func.func @transform_4(%arg0: i32, %arg1: i32, %arg2: i32) -> (i32, i32) {
    %c0_i32 = arith.constant 0 : i32
    %c0_i32_0 = arith.constant 0 : i32
    return %arg0, %c0_i32 : i32, i32
  }
  func.func @transform_5(%arg0: i32, %arg1: i32, %arg2: i32) -> (i32, i32) {
    %c0_i32 = arith.constant 0 : i32
    %c0_i32_0 = arith.constant 0 : i32
    return %c0_i32, %arg1 : i32, i32
  }
  func.func @transform_6(%arg0: i32, %arg1: i32, %arg2: i32) -> (i32, i32) {
    %c0_i32 = arith.constant 0 : i32
    %c0_i32_0 = arith.constant 0 : i32
    return %c0_i32, %arg1 : i32, i32
  }
  func.func @transform_7(%arg0: i32, %arg1: i32, %arg2: i32) -> (i32, i32) {
    %c0_i32 = arith.constant 0 : i32
    return %arg0, %arg1 : i32, i32
  }
}

</mosaic_0001>

<llo_original>
// kernel: tpu_custom_call.1
$region0: #{tpu_custom_call.1}
  #allocation0 [shape = 'u32[]', space=smem, size = 0x4, offset = 0x4, fixed_abs, tag = 'smem constant byte address 0x4 - core index']
  #allocation1 [shape = 'u32[72,128]{1,0:T(1,128)}', space=vmem, size = 0x9000, scoped, tag = 'internal scratch']
  #allocation2 [shape = 'f32[16,128]{1,0:T(8,128)}', space=vmem, size = 0x2000, scoped, tag = 'scratch operand']
  %s0 = inlined_call_operand.vmem [shape: bf16[16,256], index: 0, kind: input, shape index: {}]
  %s1 = inlined_call_operand.hbm [shape: bf16[16,256], index: 1, kind: input, shape index: {}]
  %s2 = inlined_call_operand.hbm [shape: u8[256,128], index: 2, kind: input, shape index: {}]
  %s3 = inlined_call_operand.hbm [shape: f32[1,256], index: 3, kind: input, shape index: {}]
  %s4 = inlined_call_operand.vmem [shape: f32[16,4], index: 4, kind: input, shape index: {}]
  %s5 = inlined_call_operand.vmem [shape: f32[4,256], index: 5, kind: input, shape index: {}]
  %s6 = inlined_call_operand.hbm [shape: f32[1,256], index: 6, kind: input, shape index: {}]
  %s7 = inlined_call_operand.hbm [shape: f32[16,256], index: 7, kind: output, shape index: {}]
  %s8 = sld [smem:[#allocation0]]
  $region126: #{tpu_custom_call.1} parent=0
    _
  %s10 = ssub.s32 1, %s8
  %s11 = scalar_select 0, %s10, %s8
  $region1: #{tpu_custom_call.1} parent=0
    #allocation3 [shape = 'u8[4096]{0}', space=vmem, size = 0x1000, scoped, tag = 'input window, operand 0, single buffered']
    #allocation4 [shape = 'u8[4096]{0}', space=vmem, size = 0x1000, scoped, tag = 'input window, operand 1, single buffered']
    #allocation5 [shape = 's32[2]{0}', space=sflag, size = 0x8, scoped, tag = 'scoped memory for tpu_custom_call.1']
    #allocation6 [shape = 's32[2]{0}', space=sflag, size = 0x8, scoped, tag = 'scoped memory for tpu_custom_call.1']
    #allocation7 [shape = 'u8[32768]{0}', space=vmem, size = 0x8000, scoped, tag = 'input window, operand 2']
    #allocation8 [shape = 's32[2]{0}', space=sflag, size = 0x8, scoped, tag = 'scoped memory for tpu_custom_call.1']
    #allocation9 [shape = 'u8[1024]{0}', space=vmem, size = 0x400, scoped, tag = 'input window, operand 3']
    #allocation10 [shape = 'u8[1024]{0}', space=vmem, size = 0x400, scoped, tag = 'input window, operand 6']
    #allocation11 [shape = 's32[2]{0}', space=sflag, size = 0x8, scoped, tag = 'scoped memory for tpu_custom_call.1']
    #allocation12 [shape = 'u8[16384]{0}', space=vmem, size = 0x4000, scoped, tag = 'output window, operand 0']
    %12 = vsyncpa [#allocation5], 0
    %13 = vsyncpa [#allocation8], 0
    %s14 = scalar_lea.sflag [#allocation8], 1
    %15 = vsyncpa %s14, 0
    %16 = vsyncpa [#allocation11], 0
    %s17 = scalar_lea.sflag [#allocation11], 1
    %18 = vsyncpa %s17, 0
    %19 = vsyncpa [#allocation6], 0
    %s20 = scalar_lea.sflag [#allocation6], 1
    %21 = vsyncpa %s20, 0
    loop: start=0, step=1, limit=4
    $region2: #{tpu_custom_call.1} parent=1 // loop_pre_header
      _
    $region3: #{tpu_custom_call.1} parent=1 // loop_header
      %s23 = sphi 0, %s27
      %p24 = scmp.ge.s32.totalorder %s23, 4
      %s30 = sphi 0, %s49
      %s31 = sphi 0, %s45
      %s32 = sphi 0, %s41
      %s33 = sphi 0, %s30
      %s34 = sphi 0, %s31
      %s35 = sphi 0, %s32
      %s36 = sphi 0, %s33
      %s37 = sphi 0, %s34
      %s38 = sphi 0, %s35
      %s54 = sphi 0, %s56
      %s57 = sphi 0, %s54
      %s58 = sphi 0, %s57
      %s74 = sphi 0, %s58
      %s84 = sphi 0, %s86
      %s87 = sphi 0, %s84
      %s88 = sphi 0, %s87
      %s104 = sphi 0, %s88
      %s112 = sphi 0, %s114
      %s115 = sphi 0, %s112
      %s116 = sphi 0, %s115
      %s132 = sphi 0, %s116
      %s138 = sphi 0, %s140
      %s141 = sphi 0, %s138
      %s142 = sphi 0, %s141
      %s158 = sphi 0, %s142
      %s164 = sphi 0, %s166
      %s167 = sphi 0, %s164
      %s168 = sphi 0, %s167
      %s184 = sphi 0, %s168
      %s190 = sphi 0, %s192
      %s193 = sphi 0, %s190
      %s194 = sphi 0, %s193
      %s210 = sphi 0, %s194
      %s216 = sphi 0, %s218
      %s219 = sphi 0, %s216
      %s220 = sphi 0, %s219
      %s236 = sphi 0, %s220
      %s244 = sphi 0, %s246
      %s247 = sphi 0, %s244
      %s248 = sphi 0, %s247
      %s264 = sphi 0, %s248
    $region4: #{tpu_custom_call.1} parent=1 // loop_header_branch
      %26 = sbr.rel (%p24) target = $region8
    $region5: #{tpu_custom_call.1} parent=1 // loop_body
      %s28 = ssub.s32 %s23, 1
      %s29 = ssub.s32 %s23, 2
      %s39 = sadd.s32 1, %s32
      %p40 = scmp.ge.s32.totalorder %s39, 1
      %s41 = scalar_select %p40, 0, %s39
      %s42 = sadd.s32 1, %s31
      %s43 = scalar_select %p40, %s42, %s31
      %p44 = scmp.ge.s32.totalorder %s43, 2
      %s45 = scalar_select %p44, 0, %s43
      %s46 = sadd.s32 1, %s30
      %s47 = scalar_select %p44, %s46, %s30
      %p48 = scmp.ge.s32.totalorder %s47, 1
      %s49 = scalar_select %p48, 0, %s47
      %s50 = ssub.s32 %s30, %s49
      %s51 = ssub.s32 %s32, %s41
      %s52 = sor.u32 %s50, %s51
      %p53 = scmp.eq.s32.totalorder %s52, 0
      %s55 = sadd.s32 %s54, 1
      %s56 = scalar_select %p53, %s54, %s55
      %p59 = pneg %p53
      %p60 = scmp.eq.s32.totalorder %s23, 1
      %p61 = por %p59, %p60
      %p62 = scmp.ne.s32.totalorder %s54, %s57
      %p63 = scmp.eq.s32.totalorder %s23, 0
      %p64 = por %p62, %p63
      %p65 = scmp.ne.s32.totalorder %s54, %s57
      %p66 = scmp.eq.s32.totalorder %s28, 1
      %p67 = por %p65, %p66
      %p68 = scmp.ne.s32.totalorder %s57, %s58
      %p69 = scmp.eq.s32.totalorder %s28, 0
      %p70 = por %p68, %p69
      %p71 = scmp.ne.s32.totalorder %s57, %s58
      %p72 = scmp.eq.s32.totalorder %s29, 1
      %p73 = por %p71, %p72
      %p75 = scmp.ne.s32.totalorder %s58, %s74
      %p76 = scmp.eq.s32.totalorder %s29, 0
      %p77 = por %p75, %p76
      %s78 = sadd.s32 %s32, 1
      %s79 = sadd.s32 %s41, 1
      %s80 = ssub.s32 %s30, %s49
      %s81 = ssub.s32 %s78, %s79
      %s82 = sor.u32 %s80, %s81
      %p83 = scmp.eq.s32.totalorder %s82, 0
      %s85 = sadd.s32 %s84, 1
      %s86 = scalar_select %p83, %s84, %s85
      %p89 = pneg %p83
      %p90 = scmp.eq.s32.totalorder %s23, 1
      %p91 = por %p89, %p90
      %p92 = scmp.ne.s32.totalorder %s84, %s87
      %p93 = scmp.eq.s32.totalorder %s23, 0
      %p94 = por %p92, %p93
      %p95 = scmp.ne.s32.totalorder %s84, %s87
      %p96 = scmp.eq.s32.totalorder %s28, 1
      %p97 = por %p95, %p96
      %p98 = scmp.ne.s32.totalorder %s87, %s88
      %p99 = scmp.eq.s32.totalorder %s28, 0
      %p100 = por %p98, %p99
      %p101 = scmp.ne.s32.totalorder %s87, %s88
      %p102 = scmp.eq.s32.totalorder %s29, 1
      %p103 = por %p101, %p102
      %p105 = scmp.ne.s32.totalorder %s88, %s104
      %p106 = scmp.eq.s32.totalorder %s29, 0
      %p107 = por %p105, %p106
      %s108 = ssub.s32 %s31, %s45
      %s109 = ssub.s32 %s32, %s41
      %s110 = sor.u32 %s108, %s109
      %p111 = scmp.eq.s32.totalorder %s110, 0
      %s113 = sadd.s32 %s112, 1
      %s114 = scalar_select %p111, %s112, %s113
      %p117 = pneg %p111
      %p118 = scmp.eq.s32.totalorder %s23, 1
      %p119 = por %p117, %p118
      %p120 = scmp.ne.s32.totalorder %s112, %s115
      %p121 = scmp.eq.s32.totalorder %s23, 0
      %p122 = por %p120, %p121
      %p123 = scmp.ne.s32.totalorder %s112, %s115
      %p124 = scmp.eq.s32.totalorder %s28, 1
      %p125 = por %p123, %p124
      %p126 = scmp.ne.s32.totalorder %s115, %s116
      %p127 = scmp.eq.s32.totalorder %s28, 0
      %p128 = por %p126, %p127
      %p129 = scmp.ne.s32.totalorder %s115, %s116
      %p130 = scmp.eq.s32.totalorder %s29, 1
      %p131 = por %p129, %p130
      %p133 = scmp.ne.s32.totalorder %s116, %s132
      %p134 = scmp.eq.s32.totalorder %s29, 0
      %p135 = por %p133, %p134
      %s136 = ssub.s32 %s31, %s45
      %p137 = scmp.eq.s32.totalorder %s136, 0
      %s139 = sadd.s32 %s138, 1
      %s140 = scalar_select %p137, %s138, %s139
      %p143 = pneg %p137
      %p144 = scmp.eq.s32.totalorder %s23, 1
      %p145 = por %p143, %p144
      %p146 = scmp.ne.s32.totalorder %s138, %s141
      %p147 = scmp.eq.s32.totalorder %s23, 0
      %p148 = por %p146, %p147
      %p149 = scmp.ne.s32.totalorder %s138, %s141
      %p150 = scmp.eq.s32.totalorder %s28, 1
      %p151 = por %p149, %p150
      %p152 = scmp.ne.s32.totalorder %s141, %s142
      %p153 = scmp.eq.s32.totalorder %s28, 0
      %p154 = por %p152, %p153
      %p155 = scmp.ne.s32.totalorder %s141, %s142
      %p156 = scmp.eq.s32.totalorder %s29, 1
      %p157 = por %p155, %p156
      %p159 = scmp.ne.s32.totalorder %s142, %s158
      %p160 = scmp.eq.s32.totalorder %s29, 0
      %p161 = por %p159, %p160
      %s162 = ssub.s32 %s30, %s49
      %p163 = scmp.eq.s32.totalorder %s162, 0
      %s165 = sadd.s32 %s164, 1
      %s166 = scalar_select %p163, %s164, %s165
      %p169 = pneg %p163
      %p170 = scmp.eq.s32.totalorder %s23, 1
      %p171 = por %p169, %p170
      %p172 = scmp.ne.s32.totalorder %s164, %s167
      %p173 = scmp.eq.s32.totalorder %s23, 0
      %p174 = por %p172, %p173
      %p175 = scmp.ne.s32.totalorder %s164, %s167
      %p176 = scmp.eq.s32.totalorder %s28, 1
      %p177 = por %p175, %p176
      %p178 = scmp.ne.s32.totalorder %s167, %s168
      %p179 = scmp.eq.s32.totalorder %s28, 0
      %p180 = por %p178, %p179
      %p181 = scmp.ne.s32.totalorder %s167, %s168
      %p182 = scmp.eq.s32.totalorder %s29, 1
      %p183 = por %p181, %p182
      %p185 = scmp.ne.s32.totalorder %s168, %s184
      %p186 = scmp.eq.s32.totalorder %s29, 0
      %p187 = por %p185, %p186
      %s188 = ssub.s32 %s31, %s45
      %p189 = scmp.eq.s32.totalorder %s188, 0
      %s191 = sadd.s32 %s190, 1
      %s192 = scalar_select %p189, %s190, %s191
      %p195 = pneg %p189
      %p196 = scmp.eq.s32.totalorder %s23, 1
      %p197 = por %p195, %p196
      %p198 = scmp.ne.s32.totalorder %s190, %s193
      %p199 = scmp.eq.s32.totalorder %s23, 0
      %p200 = por %p198, %p199
      %p201 = scmp.ne.s32.totalorder %s190, %s193
      %p202 = scmp.eq.s32.totalorder %s28, 1
      %p203 = por %p201, %p202
      %p204 = scmp.ne.s32.totalorder %s193, %s194
      %p205 = scmp.eq.s32.totalorder %s28, 0
      %p206 = por %p204, %p205
      %p207 = scmp.ne.s32.totalorder %s193, %s194
      %p208 = scmp.eq.s32.totalorder %s29, 1
      %p209 = por %p207, %p208
      %p211 = scmp.ne.s32.totalorder %s194, %s210
      %p212 = scmp.eq.s32.totalorder %s29, 0
      %p213 = por %p211, %p212
      %s214 = ssub.s32 %s31, %s45
      %p215 = scmp.eq.s32.totalorder %s214, 0
      %s217 = sadd.s32 %s216, 1
      %s218 = scalar_select %p215, %s216, %s217
      %p221 = pneg %p215
      %p222 = scmp.eq.s32.totalorder %s23, 1
      %p223 = por %p221, %p222
      %p224 = scmp.ne.s32.totalorder %s216, %s219
      %p225 = scmp.eq.s32.totalorder %s23, 0
      %p226 = por %p224, %p225
      %p227 = scmp.ne.s32.totalorder %s216, %s219
      %p228 = scmp.eq.s32.totalorder %s28, 1
      %p229 = por %p227, %p228
      %p230 = scmp.ne.s32.totalorder %s219, %s220
      %p231 = scmp.eq.s32.totalorder %s28, 0
      %p232 = por %p230, %p231
      %p233 = scmp.ne.s32.totalorder %s219, %s220
      %p234 = scmp.eq.s32.totalorder %s29, 1
      %p235 = por %p233, %p234
      %p237 = scmp.ne.s32.totalorder %s220, %s236
      %p238 = scmp.eq.s32.totalorder %s29, 0
      %p239 = por %p237, %p238
      %s240 = ssub.s32 %s30, %s49
      %s241 = ssub.s32 %s31, %s45
      %s242 = sor.u32 %s240, %s241
      %p243 = scmp.eq.s32.totalorder %s242, 0
      %s245 = sadd.s32 %s244, 1
      %s246 = scalar_select %p243, %s244, %s245
      %p249 = pneg %p243
      %p250 = scmp.eq.s32.totalorder %s23, 1
      %p251 = por %p249, %p250
      %p252 = scmp.ne.s32.totalorder %s244, %s247
      %p253 = scmp.eq.s32.totalorder %s23, 0
      %p254 = por %p252, %p253
      %p255 = scmp.ne.s32.totalorder %s244, %s247
      %p256 = scmp.eq.s32.totalorder %s28, 1
      %p257 = por %p255, %p256
      %p258 = scmp.ne.s32.totalorder %s247, %s248
      %p259 = scmp.eq.s32.totalorder %s28, 0
      %p260 = por %p258, %p259
      %p261 = scmp.ne.s32.totalorder %s247, %s248
      %p262 = scmp.eq.s32.totalorder %s29, 1
      %p263 = por %p261, %p262
      %p265 = scmp.ne.s32.totalorder %s248, %s264
      %p266 = scmp.eq.s32.totalorder %s29, 0
      %p267 = por %p265, %p266
      %p268 = scmp.le.s32.totalorder 1, %s23
      %p269 = scmp.lt.s32.totalorder %s23, 3
      %p270 = pnand %p268, %p269
      %p271 = pneg %p270
      // Predicated region
      $region9: #{tpu_custom_call.1} parent=5 // pred_check
        _
      $region10: #{tpu_custom_call.1} parent=5 // pred_check_branch
        %273 = sbr.rel (%p270) target = $region12
      $region11: #{tpu_custom_call.1} parent=5 // pred_region
        %s274 = ssub.s32 %s23, 1
        // Predicated region
        $region13: #{tpu_custom_call.1} parent=11 // pred_check
          %p275 = pneg %p70
        $region14: #{tpu_custom_call.1} parent=11 // pred_check_branch
          %277 = sbr.rel (%p275) target = $region16
        $region15: #{tpu_custom_call.1} parent=11 // pred_region
          %s278 = smul.u32 2, %s33
          %s279 = smul.addr %s278, 2
          %s280 = sadd.s32 %s35, %s279
          %s281 = smul.addr %s280, 4
          %s282 = scalar_lea.vmem %s0, %s281
          // Predicated region
          $region17: #{tpu_custom_call.1} parent=15 // pred_check
            _
          $region18: #{tpu_custom_call.1} parent=15 // pred_check_branch
            %284 = sbr.rel (0) target = $region20
          $region19: #{tpu_custom_call.1} parent=15 // pred_region
            // Predicated region
            $region21: #{tpu_custom_call.1} parent=19 // pred_check
              _
            $region22: #{tpu_custom_call.1} parent=19 // pred_check_branch
              %286 = sbr.rel target = $region24
            $region23: #{tpu_custom_call.1} parent=19 // pred_region
              // Predicated region
              $region36: #{tpu_custom_call.1} parent=23 // pred_check
                _
              $region37: #{tpu_custom_call.1} parent=23 // pred_check_branch
                %304 = sbr.rel (0) target = $region39
              $region38: #{tpu_custom_call.1} parent=23 // pred_region
                loop: start=0, step=1, limit=1
                $region40: #{tpu_custom_call.1} parent=38 // loop_pre_header
                  _
                $region41: #{tpu_custom_call.1} parent=38 // loop_header
                  %s306 = sphi 0, %s310
                  %p307 = scmp.ge.s32.totalorder %s306, 1
                  %s311 = sphi %s282, %s282
                  %s312 = sphi [#allocation3], [#allocation3]
                $region42: #{tpu_custom_call.1} parent=38 // loop_header_branch
                  %309 = sbr.rel (%p307) target = $region46
                $region43: #{tpu_custom_call.1} parent=38 // loop_body
                  _
                $region44: #{tpu_custom_call.1} parent=38 // loop_footer
                  %s310 = sadd.s32 1, %s306
                $region45: #{tpu_custom_call.1} parent=38 // loop_footer_branch
                  %305 = sbr.rel target = $region41
                $region46: #{tpu_custom_call.1} parent=38 // loop_exit
                  _
                %s314 = ssub.s32 16, 1
                loop: start=0, step=1, limit=1
                $region47: #{tpu_custom_call.1} parent=38 // loop_pre_header
                  _
                $region48: #{tpu_custom_call.1} parent=38 // loop_header
                  %s316 = sphi 0, %s320
                  %p317 = scmp.ge.s32.totalorder %s316, 1
                  %s321 = sphi %s282, %s282
                  %s322 = sphi [#allocation3], [#allocation3]
                $region49: #{tpu_custom_call.1} parent=38 // loop_header_branch
                  %319 = sbr.rel (%p317) target = $region53
                $region50: #{tpu_custom_call.1} parent=38 // loop_body
                  %v323 = vld [vmem:[%s321] sm:%s314]
                  %324 = vst [vmem:[%s322] sm:%s314] %v323
                  %v325 = vld [vmem:[%s321 + $0x8] sm:%s314]
                  %326 = vst [vmem:[%s322 + $0x4] sm:%s314] %v325
                $region51: #{tpu_custom_call.1} parent=38 // loop_footer
                  %s320 = sadd.s32 1, %s316
                $region52: #{tpu_custom_call.1} parent=38 // loop_footer_branch
                  %315 = sbr.rel target = $region48
                $region53: #{tpu_custom_call.1} parent=38 // loop_exit
                  _
              $region39: #{tpu_custom_call.1} parent=23 // pred_fallthru
                _
            $region24: #{tpu_custom_call.1} parent=19 // pred_fallthru
              _
            // Predicated region
            $region25: #{tpu_custom_call.1} parent=19 // pred_check
              _
            $region26: #{tpu_custom_call.1} parent=19 // pred_check_branch
              %288 = sbr.rel (0) target = $region28
            $region27: #{tpu_custom_call.1} parent=19 // pred_region
              %s290 = ssub.s32 16, 1
              loop: start=0, step=1, limit=1
              $region29: #{tpu_custom_call.1} parent=27 // loop_pre_header
                _
              $region30: #{tpu_custom_call.1} parent=27 // loop_header
                %s292 = sphi 0, %s296
                %p293 = scmp.ge.s32.totalorder %s292, 1
                %s297 = sphi %s282, %s282
                %s298 = sphi [#allocation3], [#allocation3]
              $region31: #{tpu_custom_call.1} parent=27 // loop_header_branch
                %295 = sbr.rel (%p293) target = $region35
              $region32: #{tpu_custom_call.1} parent=27 // loop_body
                %v299 = vld [vmem:[%s297] sm:%s290]
                %300 = vst [vmem:[%s298] sm:%s290] %v299
                %v301 = vld [vmem:[%s297 + $0x8] sm:%s290]
                %302 = vst [vmem:[%s298 + $0x4] sm:%s290] %v301
              $region33: #{tpu_custom_call.1} parent=27 // loop_footer
                %s296 = sadd.s32 1, %s292
              $region34: #{tpu_custom_call.1} parent=27 // loop_footer_branch
                %291 = sbr.rel target = $region30
              $region35: #{tpu_custom_call.1} parent=27 // loop_exit
                _
            $region28: #{tpu_custom_call.1} parent=19 // pred_fallthru
              _
          $region20: #{tpu_custom_call.1} parent=15 // pred_fallthru
            _
          %327 = vnop
        $region16: #{tpu_custom_call.1} parent=11 // pred_fallthru
          _
        // Predicated region
        $region54: #{tpu_custom_call.1} parent=11 // pred_check
          %p328 = pneg %p100
        $region55: #{tpu_custom_call.1} parent=11 // pred_check_branch
          %330 = sbr.rel (%p328) target = $region57
        $region56: #{tpu_custom_call.1} parent=11 // pred_region
          %s331 = sadd.s32 %s35, 1
          %s332 = smul.u32 2, %s33
          %334 = vsyncadd [#allocation5], 0
          %s335 = smul.addr %s332, 2
          %s336 = sadd.s32 %s331, %s335
          %s337 = smul.addr %s336, 4
          %s338 = scalar_lea.hbm %s1, %s337
          %s339 = sshll.u32 %s338, 4
          %s340 = int_to_ptr.hbm [resolvable:$true] %s339
          %s341 = sshll.u32 [#allocation4], 4
          %s342 = int_to_ptr.vmem [resolvable:$true] %s341
          %347 = dma.hbm_to_vmem [thread:$0]  %s340, 128, %s342, [#allocation5], 128, 64, 4
        $region57: #{tpu_custom_call.1} parent=11 // pred_fallthru
          _
        // Predicated region
        $region58: #{tpu_custom_call.1} parent=11 // pred_check
          %p348 = pneg %p180
        $region59: #{tpu_custom_call.1} parent=11 // pred_check_branch
          %350 = sbr.rel (%p348) target = $region61
        $region60: #{tpu_custom_call.1} parent=11 // pred_region
          %s351 = smul.u32 2, %s33
          %p352 = scmp.lt.s32.totalorder %s351, 1
          %s353 = scalar_select %p352, %s351, 1
          %s354 = smul.addr %s353, 8
          %s355 = scalar_lea.vmem %s4, %s354
          %s356 = smul.u32 2, %s33
        $region61: #{tpu_custom_call.1} parent=11 // pred_fallthru
          _
      $region12: #{tpu_custom_call.1} parent=5 // pred_fallthru
        _
      %p357 = scmp.lt.s32.totalorder %s23, 2
      // Predicated region
      $region62: #{tpu_custom_call.1} parent=5 // pred_check
        %p358 = pneg %p357
      $region63: #{tpu_custom_call.1} parent=5 // pred_check_branch
        %360 = sbr.rel (%p358) target = $region65
      $region64: #{tpu_custom_call.1} parent=5 // pred_region
        // Predicated region
        $region66: #{tpu_custom_call.1} parent=64 // pred_check
          %p361 = pneg %p122
        $region67: #{tpu_custom_call.1} parent=64 // pred_check_branch
          %363 = sbr.rel (%p361) target = $region69
        $region68: #{tpu_custom_call.1} parent=64 // pred_region
          %s364 = sand.u32 %s23, 1
          %s365 = scalar_lea.sflag [#allocation8], %s364
          %s366 = sand.u32 %s112, 1
          %s367 = smul.addr %s366, 32
          %s368 = scalar_lea.vmem [#allocation7], %s367
          %s369 = smul.u32 4, %s31
          %371 = vsyncadd %s365, 0
          %s372 = sadd.s32 %s32, %s369
          %s373 = smul.addr %s372, 8
          %s374 = scalar_lea.hbm %s2, %s373
          %s375 = sshll.u32 %s374, 4
          %s376 = int_to_ptr.hbm [resolvable:$true] %s375
          %s377 = sshll.u32 %s368, 4
          %s378 = int_to_ptr.vmem [resolvable:$true] %s377
          %383 = dma.hbm_to_vmem [thread:$0]  %s376, 512, %s378, %s365, 128, 128, 8
        $region69: #{tpu_custom_call.1} parent=64 // pred_fallthru
          _
        // Predicated region
        $region70: #{tpu_custom_call.1} parent=64 // pred_check
          %p384 = pneg %p148
        $region71: #{tpu_custom_call.1} parent=64 // pred_check_branch
          %386 = sbr.rel (%p384) target = $region73
        $region72: #{tpu_custom_call.1} parent=64 // pred_region
          %s387 = sand.u32 %s23, 1
          %s388 = scalar_lea.sflag [#allocation8], %s387
          %s389 = sand.u32 %s138, 1
          %s390 = scalar_lea.vmem [#allocation9], %s389
          %392 = vsyncadd %s388, 0
          %s393 = scalar_lea.hbm %s3, %s31
          %s395 = sshll.u32 %s393, 4
          %s396 = int_to_ptr.hbm [resolvable:$true] %s395
          %s397 = sshll.u32 %s390, 4
          %s398 = int_to_ptr.vmem [resolvable:$true] %s397
          %400 = dma.hbm_to_vmem [thread:$0]  %s396, 16, %s398, %s388
        $region73: #{tpu_custom_call.1} parent=64 // pred_fallthru
          _
        // Predicated region
        $region74: #{tpu_custom_call.1} parent=64 // pred_check
          %p401 = pneg %p200
        $region75: #{tpu_custom_call.1} parent=64 // pred_check_branch
          %403 = sbr.rel (%p401) target = $region77
        $region76: #{tpu_custom_call.1} parent=64 // pred_region
          %p404 = scmp.lt.s32.totalorder %s31, 1
          %s405 = scalar_select %p404, %s31, 1
          %s406 = smul.addr %s405, 4
          %s407 = scalar_lea.vmem %s5, %s406
        $region77: #{tpu_custom_call.1} parent=64 // pred_fallthru
          _
        // Predicated region
        $region78: #{tpu_custom_call.1} parent=64 // pred_check
          %p408 = pneg %p226
        $region79: #{tpu_custom_call.1} parent=64 // pred_check_branch
          %410 = sbr.rel (%p408) target = $region81
        $region80: #{tpu_custom_call.1} parent=64 // pred_region
          %s411 = sand.u32 %s216, 1
          %s412 = scalar_lea.sflag [#allocation11], %s411
          %s413 = sand.u32 %s216, 1
          %s414 = scalar_lea.vmem [#allocation10], %s413
          %416 = vsyncadd %s412, 0
          %s417 = scalar_lea.hbm %s6, %s31
          %s419 = sshll.u32 %s417, 4
          %s420 = int_to_ptr.hbm [resolvable:$true] %s419
          %s421 = sshll.u32 %s414, 4
          %s422 = int_to_ptr.vmem [resolvable:$true] %s421
          %424 = dma.hbm_to_vmem [thread:$0]  %s420, 16, %s422, %s412
        $region81: #{tpu_custom_call.1} parent=64 // pred_fallthru
          _
      $region65: #{tpu_custom_call.1} parent=5 // pred_fallthru
        _
      %p425 = scmp.le.s32.totalorder 1, %s23
      %p426 = scmp.lt.s32.totalorder %s23, 3
      %p427 = pnand %p425, %p426
      %p428 = pneg %p427
      // Predicated region
      $region82: #{tpu_custom_call.1} parent=5 // pred_check
        _
      $region83: #{tpu_custom_call.1} parent=5 // pred_check_branch
        %430 = sbr.rel (%p427) target = $region85
      $region84: #{tpu_custom_call.1} parent=5 // pred_region
        %s431 = ssub.s32 %s23, 1
        // Predicated region
        $region86: #{tpu_custom_call.1} parent=84 // pred_check
          %p432 = pneg %p70
        $region87: #{tpu_custom_call.1} parent=84 // pred_check_branch
          %434 = sbr.rel (%p432) target = $region89
        $region88: #{tpu_custom_call.1} parent=84 // pred_region
          _
        $region89: #{tpu_custom_call.1} parent=84 // pred_fallthru
          _
        // Predicated region
        $region90: #{tpu_custom_call.1} parent=84 // pred_check
          %p435 = pneg %p100
        $region91: #{tpu_custom_call.1} parent=84 // pred_check_branch
          %437 = sbr.rel (%p435) target = $region93
        $region92: #{tpu_custom_call.1} parent=84 // pred_region
          %439 = dma.done [#allocation5], 128
        $region93: #{tpu_custom_call.1} parent=84 // pred_fallthru
          _
        %s440 = sand.u32 %s28, 1
        %s441 = scalar_lea.sflag [#allocation8], %s440
        %s442 = sand.u32 %s115, 1
        %s443 = smul.addr %s442, 32
        %s444 = scalar_lea.vmem [#allocation7], %s443
        // Predicated region
        $region94: #{tpu_custom_call.1} parent=84 // pred_check
          %p445 = pneg %p128
        $region95: #{tpu_custom_call.1} parent=84 // pred_check_branch
          %447 = sbr.rel (%p445) target = $region97
        $region96: #{tpu_custom_call.1} parent=84 // pred_region
          %449 = dma.done %s441, 512
        $region97: #{tpu_custom_call.1} parent=84 // pred_fallthru
          _
        %s450 = sand.u32 %s28, 1
        %s451 = scalar_lea.sflag [#allocation8], %s450
        %s452 = sand.u32 %s141, 1
        %s453 = scalar_lea.vmem [#allocation9], %s452
        // Predicated region
        $region98: #{tpu_custom_call.1} parent=84 // pred_check
          %p454 = pneg %p154
        $region99: #{tpu_custom_call.1} parent=84 // pred_check_branch
          %456 = sbr.rel (%p454) target = $region101
        $region100: #{tpu_custom_call.1} parent=84 // pred_region
          %458 = dma.done %s451, 16
        $region101: #{tpu_custom_call.1} parent=84 // pred_fallthru
          _
        %s459 = sand.u32 %s219, 1
        %s460 = scalar_lea.sflag [#allocation11], %s459
        %s461 = sand.u32 %s219, 1
        %s462 = scalar_lea.vmem [#allocation10], %s461
        // Predicated region
        $region102: #{tpu_custom_call.1} parent=84 // pred_check
          %p463 = pneg %p232
        $region103: #{tpu_custom_call.1} parent=84 // pred_check_branch
          %465 = sbr.rel (%p463) target = $region105
        $region104: #{tpu_custom_call.1} parent=84 // pred_region
          %467 = dma.done %s460, 16
        $region105: #{tpu_custom_call.1} parent=84 // pred_fallthru
          _
        %p468 = pneg %p70
        %p469 = pneg %p67
        %p470 = pneg %p100
        %p471 = pneg %p97
        %s472 = sand.u32 %s28, 1
        %s473 = scalar_lea.sflag [#allocation8], %s472
        %s474 = sand.u32 %s115, 1
        %s475 = smul.addr %s474, 32
        %s476 = scalar_lea.vmem [#allocation7], %s475
        %p477 = pneg %p128
        %p478 = pneg %p125
        %s479 = sand.u32 %s28, 1
        %s480 = scalar_lea.sflag [#allocation8], %s479
        %s481 = sand.u32 %s141, 1
        %s482 = scalar_lea.vmem [#allocation9], %s481
        %p483 = pneg %p154
        %p484 = pneg %p151
        %s485 = smul.u32 2, %s33
        %p486 = scmp.lt.s32.totalorder %s485, 1
        %s487 = scalar_select %p486, %s485, 1
        %s488 = smul.addr %s487, 8
        %s489 = scalar_lea.vmem %s4, %s488
        %p490 = pneg %p180
        %p491 = pneg %p177
        %p492 = scmp.lt.s32.totalorder %s34, 1
        %s493 = scalar_select %p492, %s34, 1
        %s494 = smul.addr %s493, 4
        %s495 = scalar_lea.vmem %s5, %s494
        %p496 = pneg %p206
        %p497 = pneg %p203
        %s498 = sand.u32 %s219, 1
        %s499 = scalar_lea.sflag [#allocation11], %s498
        %s500 = sand.u32 %s219, 1
        %s501 = scalar_lea.vmem [#allocation10], %s500
        %p502 = pneg %p232
        %p503 = pneg %p229
        %p504 = pneg %p260
        %p505 = pneg %p257
        %s506 = sand.u32 %s247, 1
        %s507 = scalar_lea.sflag [#allocation6], %s506
        %s508 = sand.u32 %s247, 1
        %s509 = smul.addr %s508, 16
        %s510 = scalar_lea.vmem [#allocation12], %s509
        %s511 = smul.u32 2, %s33
        %s512 = sadd.s32 %s35, 1
        %s513 = smul.u32 2, %s33
        %s514 = smul.u32 4, %s34
        %s515 = smul.u32 2, %s33
        %p516 = scmp.lt.s32.totalorder %s515, 1
        %s517 = scalar_select %p516, %s515, 1
        %s518 = smul.addr %s517, 8
        %s519 = scalar_lea.vmem %s4, %s518
        %s520 = smul.u32 2, %s33
        %p521 = scmp.lt.s32.totalorder %s34, 1
        %s522 = scalar_select %p521, %s34, 1
        %s523 = smul.addr %s522, 4
        %s524 = scalar_lea.vmem %s5, %s523
        %s525 = smul.u32 2, %s33
        %p526 = scmp.eq.s32.totalorder %s35, 0
        // Predicated region
        $region106: #{tpu_custom_call.1} parent=84 // pred_check
          %p527 = pneg %p526
        $region107: #{tpu_custom_call.1} parent=84 // pred_check_branch
          %529 = sbr.rel (%p527) target = $region109
        $region108: #{tpu_custom_call.1} parent=84 // pred_region
          %530 = vst [vmem:[#allocation2] sm:$0xff] 0.0
          %531 = vst [vmem:[#allocation2 + $0x8] sm:$0xff] 0.0
        $region109: #{tpu_custom_call.1} parent=84 // pred_fallthru
          _
        %v532 = vld [vmem:[%s444] sm:$0xff]
        %v533 = vld [vmem:[%s444 + $0x8] sm:$0xff]
        %v534 = vld [vmem:[%s444 + $0x10] sm:$0xff]
        %v535 = vld [vmem:[%s444 + $0x18] sm:$0xff]
        %v536 = vunpack.c.0.s8 %v532
        %v537 = vunpack.c.1.s8 %v532
        %v538 = vunpack.c.2.s8 %v532
        %v539 = vunpack.c.3.s8 %v532
        %v540 = vunpack.c.0.s8 %v533
        %v541 = vunpack.c.1.s8 %v533
        %v542 = vunpack.c.2.s8 %v533
        %v543 = vunpack.c.3.s8 %v533
        %v544 = vunpack.c.0.s8 %v534
        %v545 = vunpack.c.1.s8 %v534
        %v546 = vunpack.c.2.s8 %v534
        %v547 = vunpack.c.3.s8 %v534
        %v548 = vunpack.c.0.s8 %v535
        %v549 = vunpack.c.1.s8 %v535
        %v550 = vunpack.c.2.s8 %v535
        %v551 = vunpack.c.3.s8 %v535
        %v552 = vand.u32 %v536, 255
        %v553 = vand.u32 %v537, 255
        %v554 = vand.u32 %v538, 255
        %v555 = vand.u32 %v539, 255
        %v556 = vand.u32 %v540, 255
        %v557 = vand.u32 %v541, 255
        %v558 = vand.u32 %v542, 255
        %v559 = vand.u32 %v543, 255
        %v560 = vand.u32 %v544, 255
        %v561 = vand.u32 %v545, 255
        %v562 = vand.u32 %v546, 255
        %v563 = vand.u32 %v547, 255
        %v564 = vand.u32 %v548, 255
        %v565 = vand.u32 %v549, 255
        %v566 = vand.u32 %v550, 255
        %v567 = vand.u32 %v551, 255
        %v568 = vshll.u32 %v552, 28
        %v569 = vshll.u32 %v553, 28
        %v570 = vshll.u32 %v554, 28
        %v571 = vshll.u32 %v555, 28
        %v572 = vshll.u32 %v556, 28
        %v573 = vshll.u32 %v557, 28
        %v574 = vshll.u32 %v558, 28
        %v575 = vshll.u32 %v559, 28
        %v576 = vshll.u32 %v560, 28
        %v577 = vshll.u32 %v561, 28
        %v578 = vshll.u32 %v562, 28
        %v579 = vshll.u32 %v563, 28
        %v580 = vshll.u32 %v564, 28
        %v581 = vshll.u32 %v565, 28
        %v582 = vshll.u32 %v566, 28
        %v583 = vshll.u32 %v567, 28
        %v584 = vshra.s32 %v568, 28
        %v585 = vshra.s32 %v569, 28
        %v586 = vshra.s32 %v570, 28
        %v587 = vshra.s32 %v571, 28
        %v588 = vshra.s32 %v572, 28
        %v589 = vshra.s32 %v573, 28
        %v590 = vshra.s32 %v574, 28
        %v591 = vshra.s32 %v575, 28
        %v592 = vshra.s32 %v576, 28
        %v593 = vshra.s32 %v577, 28
        %v594 = vshra.s32 %v578, 28
        %v595 = vshra.s32 %v579, 28
        %v596 = vshra.s32 %v580, 28
        %v597 = vshra.s32 %v581, 28
        %v598 = vshra.s32 %v582, 28
        %v599 = vshra.s32 %v583, 28
        %v600 = vcvt.s32.f32 %v584
        %v601 = vcvt.s32.f32 %v585
        %v602 = vcvt.s32.f32 %v586
        %v603 = vcvt.s32.f32 %v587
        %v604 = vcvt.s32.f32 %v588
        %v605 = vcvt.s32.f32 %v589
        %v606 = vcvt.s32.f32 %v590
        %v607 = vcvt.s32.f32 %v591
        %v608 = vcvt.s32.f32 %v592
        %v609 = vcvt.s32.f32 %v593
        %v610 = vcvt.s32.f32 %v594
        %v611 = vcvt.s32.f32 %v595
        %v612 = vcvt.s32.f32 %v596
        %v613 = vcvt.s32.f32 %v597
        %v614 = vcvt.s32.f32 %v598
        %v615 = vcvt.s32.f32 %v599
        %v616 = vpack.c.bf16 %v601, %v600
        %v617 = vpack.c.bf16 %v603, %v602
        %v618 = vpack.c.bf16 %v605, %v604
        %v619 = vpack.c.bf16 %v607, %v606
        %v620 = vpack.c.bf16 %v609, %v608
        %v621 = vpack.c.bf16 %v611, %v610
        %v622 = vpack.c.bf16 %v613, %v612
        %v623 = vpack.c.bf16 %v615, %v614
        %v624 = vshll.u32 %v552, 24
        %v625 = vshll.u32 %v553, 24
        %v626 = vshll.u32 %v554, 24
        %v627 = vshll.u32 %v555, 24
        %v628 = vshll.u32 %v556, 24
        %v629 = vshll.u32 %v557, 24
        %v630 = vshll.u32 %v558, 24
        %v631 = vshll.u32 %v559, 24
        %v632 = vshll.u32 %v560, 24
        %v633 = vshll.u32 %v561, 24
        %v634 = vshll.u32 %v562, 24
        %v635 = vshll.u32 %v563, 24
        %v636 = vshll.u32 %v564, 24
        %v637 = vshll.u32 %v565, 24
        %v638 = vshll.u32 %v566, 24
        %v639 = vshll.u32 %v567, 24
        %v640 = vshra.s32 %v624, 28
        %v641 = vshra.s32 %v625, 28
        %v642 = vshra.s32 %v626, 28
        %v643 = vshra.s32 %v627, 28
        %v644 = vshra.s32 %v628, 28
        %v645 = vshra.s32 %v629, 28
        %v646 = vshra.s32 %v630, 28
        %v647 = vshra.s32 %v631, 28
        %v648 = vshra.s32 %v632, 28
        %v649 = vshra.s32 %v633, 28
        %v650 = vshra.s32 %v634, 28
        %v651 = vshra.s32 %v635, 28
        %v652 = vshra.s32 %v636, 28
        %v653 = vshra.s32 %v637, 28
        %v654 = vshra.s32 %v638, 28
        %v655 = vshra.s32 %v639, 28
        %v656 = vcvt.s32.f32 %v640
        %v657 = vcvt.s32.f32 %v641
        %v658 = vcvt.s32.f32 %v642
        %v659 = vcvt.s32.f32 %v643
        %v660 = vcvt.s32.f32 %v644
        %v661 = vcvt.s32.f32 %v645
        %v662 = vcvt.s32.f32 %v646
        %v663 = vcvt.s32.f32 %v647
        %v664 = vcvt.s32.f32 %v648
        %v665 = vcvt.s32.f32 %v649
        %v666 = vcvt.s32.f32 %v650
        %v667 = vcvt.s32.f32 %v651
        %v668 = vcvt.s32.f32 %v652
        %v669 = vcvt.s32.f32 %v653
        %v670 = vcvt.s32.f32 %v654
        %v671 = vcvt.s32.f32 %v655
        %v672 = vpack.c.bf16 %v657, %v656
        %v673 = vpack.c.bf16 %v659, %v658
        %v674 = vpack.c.bf16 %v661, %v660
        %v675 = vpack.c.bf16 %v663, %v662
        %v676 = vpack.c.bf16 %v665, %v664
        %v677 = vpack.c.bf16 %v667, %v666
        %v678 = vpack.c.bf16 %v669, %v668
        %v679 = vpack.c.bf16 %v671, %v670
        %v680 = vld [vmem:[#allocation2] sm:$0xff]
        %v681 = vld [vmem:[#allocation2 + $0x8] sm:$0xff]
        %v682 = vld [vmem:[#allocation3] sm:$0xf]
        %v683 = vld [vmem:[#allocation3 + $0x4] sm:$0xf]
        %v684 = vld [vmem:[#allocation4] sm:$0xf]
        %v685 = vld [vmem:[#allocation4 + $0x4] sm:$0xf]
        %v688 = vunpack.c.l.b16 %v684
        %v689 = vunpack.c.l.b16 %v685
        %v690 = vpack.c.b16 %v689, %v688
        %692 = vmatpush.bf16.xpose.msra.mxu0 %v679
        %693 = vmatpush.bf16.xpose.msra.mxu0 %v678
        %694 = vmatpush.bf16.xpose.msra.mxu0 %v677
        %695 = vmatpush.bf16.xpose.msra.mxu0 %v676
        %696 = vmatpush.bf16.xpose.msra.mxu0 %v675
        %697 = vmatpush.bf16.xpose.msra.mxu0 %v674
        %698 = vmatpush.bf16.xpose.msra.mxu0 %v673
        %699 = vmatpush.bf16.xpose.msra.mxu0 %v672
        %700 = vmatmul.bf16.gmra.mxu0 %v690
        %v701 = vpop.f32.mrf.mxu0
        %v702 = vadd.f32 0.0, %v701
        %v703 = vpop.f32.mrf.mxu0
        %v704 = vadd.f32 0.0, %v703
        %705 = vdwg.mxu0
        %v708 = vunpack.c.l.b16 %v682
        %v709 = vunpack.c.l.b16 %v683
        %v710 = vpack.c.b16 %v709, %v708
        %712 = vmatpush.bf16.xpose.msra.mxu0 %v623
        %713 = vmatpush.bf16.xpose.msra.mxu0 %v622
        %714 = vmatpush.bf16.xpose.msra.mxu0 %v621
        %715 = vmatpush.bf16.xpose.msra.mxu0 %v620
        %716 = vmatpush.bf16.xpose.msra.mxu0 %v619
        %717 = vmatpush.bf16.xpose.msra.mxu0 %v618
        %718 = vmatpush.bf16.xpose.msra.mxu0 %v617
        %719 = vmatpush.bf16.xpose.msra.mxu0 %v616
        %720 = vmatmul.bf16.gmra.mxu0 %v710
        %v721 = vpop.f32.mrf.mxu0
        %v722 = vadd.f32 %v702, %v721
        %v723 = vpop.f32.mrf.mxu0
        %v724 = vadd.f32 %v704, %v723
        %725 = vdwg.mxu0
        %v726 = vadd.f32 %v680, %v722
        %v727 = vadd.f32 %v681, %v724
        %728 = vst [vmem:[#allocation2] sm:$0xff] %v726
        %729 = vst [vmem:[#allocation2 + $0x8] sm:$0xff] %v727
        // Predicated region
        $region110: #{tpu_custom_call.1} parent=84 // pred_check
          %p730 = pneg %p526
        $region111: #{tpu_custom_call.1} parent=84 // pred_check_branch
          %732 = sbr.rel (%p730) target = $region113
        $region112: #{tpu_custom_call.1} parent=84 // pred_region
          %v733 = vld [vmem:[#allocation2] sm:$0xff]
          %v734 = vld [vmem:[#allocation2 + $0x8] sm:$0xff]
          %v735 = vld [vmem:[%s453] sm:$0x1]
          %v737 = vperm.slane %v735, 0
          %v739 = vmul.f32 %v733, %v737
          %v740 = vmul.f32 %v734, %v737
          %v741 = vld [vmem:[%s519] sm:$0xff]
          %v742 = vld [vmem:[%s519 + $0x8] sm:$0xff]
          %v743 = vld [vmem:[%s524] sm:$0xf]
          %745 = vset.pattern.permute.xlu0 0
          %746 = vperm.xlu0 %745, %v741
          %v747 = vpop.permute.xlu0 %746
          %750 = vset.pattern.permute.xlu0 0
          %751 = vperm.xlu0 %750, %v742
          %v752 = vpop.permute.xlu0 %751
          %v754 = vperm.slane %v743, 0
          %v755 = vmul.f32 %v747, %v754
          %v756 = vmul.f32 %v752, %v754
          %v757 = vadd.f32 %v739, %v755
          %v758 = vadd.f32 %v740, %v756
          %759 = vset.pattern.permute.xlu0 1
          %760 = vperm.xlu0 %759, %v741
          %v761 = vpop.permute.xlu0 %760
          %763 = vset.pattern.permute.xlu0 1
          %764 = vperm.xlu0 %763, %v742
          %v765 = vpop.permute.xlu0 %764
          %v767 = vperm.slane %v743, 1
          %v768 = vmul.f32 %v761, %v767
          %v769 = vmul.f32 %v765, %v767
          %v770 = vadd.f32 %v757, %v768
          %v771 = vadd.f32 %v758, %v769
          %772 = vset.pattern.permute.xlu0 2
          %773 = vperm.xlu0 %772, %v741
          %v774 = vpop.permute.xlu0 %773
          %776 = vset.pattern.permute.xlu0 2
          %777 = vperm.xlu0 %776, %v742
          %v778 = vpop.permute.xlu0 %777
          %v780 = vperm.slane %v743, 2
          %v781 = vmul.f32 %v774, %v780
          %v782 = vmul.f32 %v778, %v780
          %v783 = vadd.f32 %v770, %v781
          %v784 = vadd.f32 %v771, %v782
          %785 = vset.pattern.permute.xlu0 3
          %786 = vperm.xlu0 %785, %v741
          %v787 = vpop.permute.xlu0 %786
          %789 = vset.pattern.permute.xlu0 3
          %790 = vperm.xlu0 %789, %v742
          %v791 = vpop.permute.xlu0 %790
          %v793 = vperm.slane %v743, 3
          %v794 = vmul.f32 %v787, %v793
          %v795 = vmul.f32 %v791, %v793
          %v796 = vadd.f32 %v783, %v794
          %v797 = vadd.f32 %v784, %v795
          %v798 = vld [vmem:[%s462] sm:$0x1]
          %v800 = vperm.slane %v798, 0
          %v802 = vadd.f32 %v796, %v800
          %v803 = vadd.f32 %v797, %v800
          %804 = vst [vmem:[%s510] sm:$0xff] %v802
          %805 = vst [vmem:[%s510 + $0x8] sm:$0xff] %v803
        $region113: #{tpu_custom_call.1} parent=84 // pred_fallthru
          _
        %s806 = sand.u32 %s247, 1
        %s807 = scalar_lea.sflag [#allocation6], %s806
        %s808 = sand.u32 %s247, 1
        %s809 = smul.addr %s808, 16
        %s810 = scalar_lea.vmem [#allocation12], %s809
        // Predicated region
        $region114: #{tpu_custom_call.1} parent=84 // pred_check
          %p811 = pneg %p257
        $region115: #{tpu_custom_call.1} parent=84 // pred_check_branch
          %813 = sbr.rel (%p811) target = $region117
        $region116: #{tpu_custom_call.1} parent=84 // pred_region
          %s814 = smul.u32 2, %s33
          %816 = vsyncadd %s807, 0
          %s817 = smul.addr %s814, 2
          %s818 = sadd.s32 %s34, %s817
          %s819 = smul.addr %s818, 8
          %s820 = scalar_lea.hbm %s7, %s819
          %s821 = sshll.u32 %s810, 4
          %s822 = int_to_ptr.vmem [resolvable:$true] %s821
          %s823 = sshll.u32 %s820, 4
          %s824 = int_to_ptr.hbm [resolvable:$true] %s823
          %829 = dma.vmem_to_hbm [thread:$0]  %s822, 256, %s824, %s807, 128, 256, 8
        $region117: #{tpu_custom_call.1} parent=84 // pred_fallthru
          _
      $region85: #{tpu_custom_call.1} parent=5 // pred_fallthru
        _
      %p830 = scmp.le.s32.totalorder 2, %s23
      // Predicated region
      $region118: #{tpu_custom_call.1} parent=5 // pred_check
        %p831 = pneg %p830
      $region119: #{tpu_custom_call.1} parent=5 // pred_check_branch
        %833 = sbr.rel (%p831) target = $region121
      $region120: #{tpu_custom_call.1} parent=5 // pred_region
        %s834 = ssub.s32 %s23, 2
        // Predicated region
        $region122: #{tpu_custom_call.1} parent=120 // pred_check
          %p835 = pneg %p263
        $region123: #{tpu_custom_call.1} parent=120 // pred_check_branch
          %837 = sbr.rel (%p835) target = $region125
        $region124: #{tpu_custom_call.1} parent=120 // pred_region
          %s838 = sand.u32 %s248, 1
          %s839 = scalar_lea.sflag [#allocation6], %s838
          %s840 = sand.u32 %s248, 1
          %s841 = smul.addr %s840, 16
          %s842 = scalar_lea.vmem [#allocation12], %s841
          %844 = dma.done %s839, 256
        $region125: #{tpu_custom_call.1} parent=120 // pred_fallthru
          _
      $region121: #{tpu_custom_call.1} parent=5 // pred_fallthru
        _
    $region6: #{tpu_custom_call.1} parent=1 // loop_footer
      %s27 = sadd.s32 1, %s23
    $region7: #{tpu_custom_call.1} parent=1 // loop_footer_branch
      %22 = sbr.rel target = $region3
    $region8: #{tpu_custom_call.1} parent=1 // loop_exit
      _
    %845 = vsyncpa [#allocation5], 1
    %s846 = scalar_lea.sflag [#allocation5], 1
    %847 = vsyncpa %s846, 1
    %848 = vsyncpa [#allocation8], 1
    %s849 = scalar_lea.sflag [#allocation8], 1
    %850 = vsyncpa %s849, 1
    %851 = vsyncpa [#allocation11], 1
    %s852 = scalar_lea.sflag [#allocation11], 1
    %853 = vsyncpa %s852, 1
    %854 = vsyncpa [#allocation6], 1
    %s855 = scalar_lea.sflag [#allocation6], 1
    %856 = vsyncpa %s855, 1

</llo_original>
